<compile_context>
chip_gen: v5e
topology: v5e:2x2
jax: 0.10.0
libtpu: 0.0.40
codegen_flags: <defaults>
</compile_context>

<pallas_src>
import functools

import jax
import jax.numpy as jnp
from jax.experimental import pallas as pl
from jax.experimental.pallas import tpu as pltpu

HIDDEN = 128


def mlp_kernel(x_ref, w1_ref, b1_ref, w2_ref, b2_ref, w3_ref, b3_ref, o_ref,
               *, num_classes):
    # fc1 + ReLU.  Cast x to the matmul dtype in-kernel (f32 HBM read, free
    # VPU cast) and accumulate in f32 on the MXU.
    x = x_ref[...].astype(w1_ref.dtype)
    h1 = jnp.dot(x, w1_ref[...], preferred_element_type=jnp.float32)
    h1 = jnp.maximum(h1 + b1_ref[...], 0.0)
    # fc2 + ReLU
    h2 = jnp.dot(h1.astype(w2_ref.dtype), w2_ref[...],
                 preferred_element_type=jnp.float32)
    h2 = jnp.maximum(h2 + b2_ref[...], 0.0)
    # fc3: lane-padded matmul (w3 padded to a multiple of 128 lanes in VMEM),
    # then slice to the true class count before the store -> small writeback.
    out = jnp.dot(h2.astype(w3_ref.dtype), w3_ref[...],
                  preferred_element_type=jnp.float32) + b3_ref[...]
    o_ref[...] = out[:, :num_classes].astype(o_ref.dtype)


def prepare_params(params, *, matmul_dtype=jnp.bfloat16):
    """One-time (per parameter set) prep: pad fc3 to 128 lanes for the MXU and
    cast weights to the matmul dtype.  Biases stay f32 (v5e VPU has no bf16)."""
    C = params["w3"].shape[1]
    C_pad = max(128, ((C + 127) // 128) * 128)
    w3 = jnp.pad(params["w3"], ((0, 0), (0, C_pad - C)))
    b3 = jnp.pad(params["b3"], ((0, 0), (0, C_pad - C)))
    return dict(
        w1=params["w1"].astype(matmul_dtype),
        b1=params["b1"].astype(jnp.float32),
        w2=params["w2"].astype(matmul_dtype),
        b2=params["b2"].astype(jnp.float32),
        w3=w3.astype(matmul_dtype),
        b3=b3.astype(jnp.float32),
        num_classes=C,
        c_pad=C_pad,
    )


def _pick_tile_b(B):
    if B <= 1024:
        # Single grid step: grid is a sequential loop on one TC (v5e/v6e), so
        # splitting small batches only adds per-step overhead.
        return max(8, ((B + 7) // 8) * 8)
    # Large B: big tiles amortize per-step overhead; prefer an even number of
    # steps so v7x megacore sharding is balanced.
    tile_b = 512
    if pl.cdiv(B, tile_b) % 2 == 1:
        for cand in (1024, 256):
            if pl.cdiv(B, cand) % 2 == 0:
                tile_b = cand
                break
    return tile_b


def backbone_classifier_forward(x, prepared, *, tile_b=None):
    """x: (B, input_dim) float32.  prepared: output of prepare_params().
    Returns (B, num_classes) float32 logits."""
    B, D = x.shape
    C = prepared["num_classes"]
    C_pad = prepared["c_pad"]
    mm_dtype = prepared["w1"].dtype

    if tile_b is None:
        tile_b = _pick_tile_b(B)
    n_steps = pl.cdiv(B, tile_b)
    B_pad = n_steps * tile_b
    if B_pad != B:
        x = jnp.pad(x, ((0, B_pad - B), (0, 0)))

    mm_bytes = jnp.dtype(mm_dtype).itemsize
    x_tile_bytes = tile_b * D * x.dtype.itemsize
    out_tile_bytes = tile_b * C * 4
    weight_bytes = (D * HIDDEN + HIDDEN * HIDDEN + HIDDEN * C_pad) * mm_bytes \
        + (2 * HIDDEN + C_pad) * 4
    vmem_needed = 2 * (x_tile_bytes + out_tile_bytes) + 2 * weight_bytes \
        + 2 * tile_b * HIDDEN * 4  # h1/h2 f32 intermediates
    compiler_kwargs = dict(dimension_semantics=("parallel",))
    if vmem_needed > 12 * 1024 * 1024:
        compiler_kwargs["vmem_limit_bytes"] = min(
            int(vmem_needed * 1.5), 64 * 1024 * 1024)

    flops = 2 * B_pad * (D * HIDDEN + HIDDEN * HIDDEN + HIDDEN * C_pad)
    bytes_accessed = (B_pad * D * x.dtype.itemsize      # x read
                      + weight_bytes                    # weights/biases read
                      + B_pad * C * 4)                  # logits write

    out = pl.pallas_call(
        functools.partial(mlp_kernel, num_classes=C),
        out_shape=jax.ShapeDtypeStruct((B_pad, C), jnp.float32),
        grid=(n_steps,),
        in_specs=[
            pl.BlockSpec((tile_b, D), lambda i: (i, 0)),        # x tile (f32)
            pl.BlockSpec((D, HIDDEN), lambda i: (0, 0)),        # w1 (resident)
            pl.BlockSpec((1, HIDDEN), lambda i: (0, 0)),        # b1
            pl.BlockSpec((HIDDEN, HIDDEN), lambda i: (0, 0)),   # w2
            pl.BlockSpec((1, HIDDEN), lambda i: (0, 0)),        # b2
            pl.BlockSpec((HIDDEN, C_pad), lambda i: (0, 0)),    # w3 (padded)
            pl.BlockSpec((1, C_pad), lambda i: (0, 0)),         # b3 (padded)
        ],
        out_specs=pl.BlockSpec((tile_b, C), lambda i: (i, 0)),  # unpadded out
        compiler_params=pltpu.CompilerParams(**compiler_kwargs),
        cost_estimate=pl.CostEstimate(flops=flops, transcendentals=0,
                                      bytes_accessed=bytes_accessed),
    )(x, prepared["w1"], prepared["b1"], prepared["w2"], prepared["b2"],
      prepared["w3"], prepared["b3"])

    return out if B_pad == B else out[:B]


def init_params(key, input_dim, num_classes):
    """Deterministic init matching nn.Linear layer shapes (values synthetic;
    kernel semantics are what is reproduced).  Weights in (in, out) layout."""
    k1, k2, k3, k4, k5, k6 = jax.random.split(key, 6)

    def linear(kw, kb, fan_in, fan_out):
        # torch.nn.Linear default: U(-1/sqrt(fan_in), 1/sqrt(fan_in))
        bound = 1.0 / jnp.sqrt(fan_in)
        w = jax.random.uniform(kw, (fan_in, fan_out), jnp.float32, -bound, bound)
        b = jax.random.uniform(kb, (1, fan_out), jnp.float32, -bound, bound)
        return w, b

    w1, b1 = linear(k1, k2, input_dim, HIDDEN)
    w2, b2 = linear(k3, k4, HIDDEN, HIDDEN)
    w3, b3 = linear(k5, k6, HIDDEN, num_classes)
    return dict(w1=w1, b1=b1, w2=w2, b2=b2, w3=w3, b3=b3)


def reference_forward(x, p):
    h1 = jnp.maximum(x @ p["w1"] + p["b1"], 0.0)
    h2 = jnp.maximum(h1 @ p["w2"] + p["b2"], 0.0)
    return h2 @ p["w3"] + p["b3"]


if __name__ == "__main__":
    key = jax.random.PRNGKey(0)
    kx, kp = jax.random.split(key)

    batch = 16
    input_dim = 32
    num_classes = 10

    x = jax.random.normal(kx, (batch, input_dim), jnp.float32)
    params = init_params(kp, input_dim, num_classes)
    ref = reference_forward(x, params)

    # f32 matmul path: must match the reference tightly.
    prep_f32 = prepare_params(params, matmul_dtype=jnp.float32)
    out_f32 = backbone_classifier_forward(x, prep_f32)
    out_f32 = jax.block_until_ready(out_f32)
    assert out_f32.shape == (batch, num_classes)
    assert jnp.allclose(out_f32, ref, atol=1e-5, rtol=1e-5), "f32 mismatch vs reference"

    # bf16 matmul path (default, MXU-native on v6e/v7x): looser tolerance.
    prep_bf16 = prepare_params(params)  # bfloat16 weights, f32 biases
    out_bf16 = backbone_classifier_forward(x, prep_bf16)
    out_bf16 = jax.block_until_ready(out_bf16)
    assert out_bf16.shape == (batch, num_classes)
    assert jnp.allclose(out_bf16, ref, atol=5e-2, rtol=5e-2), "bf16 mismatch vs reference"

    print("KERNEL_OK")
</pallas_src>

<mosaic_0001>
module attributes {stable_mosaic.version = 11 : i64} {
  func.func @mlp_kernel(%arg0: i32, %arg1: memref<16x32xf32, #tpu.memory_space<vmem>>, %arg2: memref<32x128xf32, #tpu.memory_space<vmem>>, %arg3: memref<1x128xf32, #tpu.memory_space<vmem>>, %arg4: memref<128x128xf32, #tpu.memory_space<vmem>>, %arg5: memref<1x128xf32, #tpu.memory_space<vmem>>, %arg6: memref<128x128xf32, #tpu.memory_space<vmem>>, %arg7: memref<1x128xf32, #tpu.memory_space<vmem>>, %arg8: memref<16x10xf32, #tpu.memory_space<vmem>>) attributes {dimension_semantics = [#tpu.dimension_semantics<parallel>], iteration_bounds = array<i64: 1>, scalar_prefetch = 0 : i64, scratch_operands = 0 : i64, tpu.core_type = #tpu.core_type<tc>, window_params = [{transform_indices = @transform_0, window_bounds = array<i64: 16, 32>}, {pipeline_mode = #tpu.pipeline_mode<synchronous>, transform_indices = @transform_1, window_bounds = array<i64: 32, 128>}, {pipeline_mode = #tpu.pipeline_mode<synchronous>, transform_indices = @transform_2, window_bounds = array<i64: 1, 128>}, {pipeline_mode = #tpu.pipeline_mode<synchronous>, transform_indices = @transform_3, window_bounds = array<i64: 128, 128>}, {pipeline_mode = #tpu.pipeline_mode<synchronous>, transform_indices = @transform_4, window_bounds = array<i64: 1, 128>}, {pipeline_mode = #tpu.pipeline_mode<synchronous>, transform_indices = @transform_5, window_bounds = array<i64: 128, 128>}, {pipeline_mode = #tpu.pipeline_mode<synchronous>, transform_indices = @transform_6, window_bounds = array<i64: 1, 128>}, {transform_indices = @transform_7, window_bounds = array<i64: 16, 10>}]} {
    %c0 = arith.constant 0 : index
    %c0_0 = arith.constant 0 : index
    %0 = vector.load %arg1[%c0, %c0_0] : memref<16x32xf32, #tpu.memory_space<vmem>>, vector<16x32xf32>
    %c0_1 = arith.constant 0 : index
    %c0_2 = arith.constant 0 : index
    %1 = vector.load %arg2[%c0_1, %c0_2] : memref<32x128xf32, #tpu.memory_space<vmem>>, vector<32x128xf32>
    %cst = arith.constant dense<0.000000e+00> : vector<16x128xf32>
    %2 = tpu.matmul %0, %1, %cst {dimension_numbers = #tpu.dot_dimension_numbers<[1], [0], [0], [1], [0, 0, 1, 1], [], []>} : vector<16x32xf32>, vector<32x128xf32>, vector<16x128xf32> -> vector<16x128xf32>
    %c0_3 = arith.constant 0 : index
    %c0_4 = arith.constant 0 : index
    %3 = vector.load %arg3[%c0_3, %c0_4] : memref<1x128xf32, #tpu.memory_space<vmem>>, vector<1x128xf32>
    %4 = vector.broadcast %3 : vector<1x128xf32> to vector<16x128xf32>
    %5 = arith.addf %2, %4 : vector<16x128xf32>
    %cst_5 = arith.constant 0.000000e+00 : f32
    %6 = vector.broadcast %cst_5 : f32 to vector<16x128xf32>
    %7 = arith.maximumf %5, %6 : vector<16x128xf32>
    %c0_6 = arith.constant 0 : index
    %c0_7 = arith.constant 0 : index
    %8 = vector.load %arg4[%c0_6, %c0_7] : memref<128x128xf32, #tpu.memory_space<vmem>>, vector<128x128xf32>
    %cst_8 = arith.constant dense<0.000000e+00> : vector<16x128xf32>
    %9 = tpu.matmul %7, %8, %cst_8 {dimension_numbers = #tpu.dot_dimension_numbers<[1], [0], [0], [1], [0, 0, 1, 1], [], []>} : vector<16x128xf32>, vector<128x128xf32>, vector<16x128xf32> -> vector<16x128xf32>
    %c0_9 = arith.constant 0 : index
    %c0_10 = arith.constant 0 : index
    %10 = vector.load %arg5[%c0_9, %c0_10] : memref<1x128xf32, #tpu.memory_space<vmem>>, vector<1x128xf32>
    %11 = vector.broadcast %10 : vector<1x128xf32> to vector<16x128xf32>
    %12 = arith.addf %9, %11 : vector<16x128xf32>
    %cst_11 = arith.constant 0.000000e+00 : f32
    %13 = vector.broadcast %cst_11 : f32 to vector<16x128xf32>
    %14 = arith.maximumf %12, %13 : vector<16x128xf32>
    %c0_12 = arith.constant 0 : index
    %c0_13 = arith.constant 0 : index
    %15 = vector.load %arg6[%c0_12, %c0_13] : memref<128x128xf32, #tpu.memory_space<vmem>>, vector<128x128xf32>
    %cst_14 = arith.constant dense<0.000000e+00> : vector<16x128xf32>
    %16 = tpu.matmul %14, %15, %cst_14 {dimension_numbers = #tpu.dot_dimension_numbers<[1], [0], [0], [1], [0, 0, 1, 1], [], []>} : vector<16x128xf32>, vector<128x128xf32>, vector<16x128xf32> -> vector<16x128xf32>
    %c0_15 = arith.constant 0 : index
    %c0_16 = arith.constant 0 : index
    %17 = vector.load %arg7[%c0_15, %c0_16] : memref<1x128xf32, #tpu.memory_space<vmem>>, vector<1x128xf32>
    %18 = vector.broadcast %17 : vector<1x128xf32> to vector<16x128xf32>
    %19 = arith.addf %16, %18 : vector<16x128xf32>
    %20 = vector.extract_strided_slice %19 {offsets = [0, 0], sizes = [16, 10], strides = [1, 1]} : vector<16x128xf32> to vector<16x10xf32>
    %c0_17 = arith.constant 0 : index
    %c0_18 = arith.constant 0 : index
    %21 = vector.load %arg8[%c0_17, %c0_18] : memref<16x10xf32, #tpu.memory_space<vmem>>, vector<16x10xf32>
    tpu.vector_store %arg8[%c0_17, %c0_18], %20 {strides = array<i32>} : memref<16x10xf32, #tpu.memory_space<vmem>>, vector<16x10xf32>,
    return
  }
  func.func @transform_0(%arg0: i32) -> (i32, i32) {
    %c0_i32 = arith.constant 0 : i32
    %c0_i32_0 = arith.constant 0 : i32
    return %arg0, %c0_i32 : i32, i32
  }
  func.func @transform_1(%arg0: i32) -> (i32, i32) {
    %c0_i32 = arith.constant 0 : i32
    %c0_i32_0 = arith.constant 0 : i32
    %c0_i32_1 = arith.constant 0 : i32
    return %c0_i32, %c0_i32_0 : i32, i32
  }
  func.func @transform_2(%arg0: i32) -> (i32, i32) {
    %c0_i32 = arith.constant 0 : i32
    %c0_i32_0 = arith.constant 0 : i32
    %c0_i32_1 = arith.constant 0 : i32
    return %c0_i32, %c0_i32_0 : i32, i32
  }
  func.func @transform_3(%arg0: i32) -> (i32, i32) {
    %c0_i32 = arith.constant 0 : i32
    %c0_i32_0 = arith.constant 0 : i32
    %c0_i32_1 = arith.constant 0 : i32
    return %c0_i32, %c0_i32_0 : i32, i32
  }
  func.func @transform_4(%arg0: i32) -> (i32, i32) {
    %c0_i32 = arith.constant 0 : i32
    %c0_i32_0 = arith.constant 0 : i32
    %c0_i32_1 = arith.constant 0 : i32
    return %c0_i32, %c0_i32_0 : i32, i32
  }
  func.func @transform_5(%arg0: i32) -> (i32, i32) {
    %c0_i32 = arith.constant 0 : i32
    %c0_i32_0 = arith.constant 0 : i32
    %c0_i32_1 = arith.constant 0 : i32
    return %c0_i32, %c0_i32_0 : i32, i32
  }
  func.func @transform_6(%arg0: i32) -> (i32, i32) {
    %c0_i32 = arith.constant 0 : i32
    %c0_i32_0 = arith.constant 0 : i32
    %c0_i32_1 = arith.constant 0 : i32
    return %c0_i32, %c0_i32_0 : i32, i32
  }
  func.func @transform_7(%arg0: i32) -> (i32, i32) {
    %c0_i32 = arith.constant 0 : i32
    %c0_i32_0 = arith.constant 0 : i32
    return %arg0, %c0_i32 : i32, i32
  }
}

</mosaic_0001>

<llo_original>
// kernel: tpu_custom_call.1
$region0: #{tpu_custom_call.1}
  #allocation0 [shape = 'u32[]', space=smem, size = 0x4, offset = 0x4, fixed_abs, tag = 'smem constant byte address 0x4 - core index']
  #allocation1 [shape = 'u32[72,128]{1,0:T(1,128)}', space=vmem, size = 0x9000, scoped, tag = 'internal scratch']
  %s0 = inlined_call_operand.hbm [shape: f32[16,32], index: 0, kind: input, shape index: {}]
  %s1 = inlined_call_operand.hbm [shape: f32[32,128], index: 1, kind: input, shape index: {}]
  %s2 = inlined_call_operand.vmem [shape: f32[1,128], index: 2, kind: input, shape index: {}]
  %s3 = inlined_call_operand.hbm [shape: f32[128,128], index: 3, kind: input, shape index: {}]
  %s4 = inlined_call_operand.vmem [shape: f32[1,128], index: 4, kind: input, shape index: {}]
  %s5 = inlined_call_operand.hbm [shape: f32[128,128], index: 5, kind: input, shape index: {}]
  %s6 = inlined_call_operand.vmem [shape: f32[1,128], index: 6, kind: input, shape index: {}]
  %s7 = inlined_call_operand.hbm [shape: f32[16,10], index: 7, kind: output, shape index: {}]
  %s8 = sld [smem:[#allocation0]]
  $region54: #{tpu_custom_call.1} parent=0
    _
  %s10 = ssub.s32 1, %s8
  %s11 = scalar_select 0, %s10, %s8
  $region1: #{tpu_custom_call.1} parent=0
    #allocation2 [shape = 'u8[8192]{0}', space=vmem, size = 0x2000, scoped, tag = 'input window, operand 0, single buffered']
    #allocation3 [shape = 's32[1]{0}', space=sflag, size = 0x4, scoped, tag = 'scoped memory for tpu_custom_call.1']
    #allocation4 [shape = 's32[1]{0}', space=sflag, size = 0x4, scoped, tag = 'scoped memory for tpu_custom_call.1']
    #allocation5 [shape = 'u8[16384]{0}', space=vmem, size = 0x4000, scoped, tag = 'input window, operand 1, single buffered']
    #allocation6 [shape = 's32[1]{0}', space=sflag, size = 0x4, scoped, tag = 'scoped memory for tpu_custom_call.1']
    #allocation7 [shape = 'u8[65536]{0}', space=vmem, size = 0x10000, scoped, tag = 'input window, operand 3, single buffered']
    #allocation8 [shape = 'u8[65536]{0}', space=vmem, size = 0x10000, scoped, tag = 'input window, operand 5, single buffered']
    #allocation9 [shape = 's32[1]{0}', space=sflag, size = 0x4, scoped, tag = 'scoped memory for tpu_custom_call.1']
    #allocation10 [shape = 'u8[8192]{0}', space=vmem, size = 0x2000, scoped, tag = 'output window, operand 0, single buffered']
    %12 = vsyncpa [#allocation3], 0
    %13 = vsyncpa [#allocation6], 0
    %14 = vsyncpa [#allocation9], 0
    %15 = vsyncpa [#allocation4], 0
    // Predicated region
    $region2: #{tpu_custom_call.1} parent=1 // pred_check
      _
    $region3: #{tpu_custom_call.1} parent=1 // pred_check_branch
      %17 = sbr.rel (0) target = $region5
    $region4: #{tpu_custom_call.1} parent=1 // pred_region
      %19 = vsyncadd [#allocation3], 0
      %s20 = sshll.u32 %s0, 4
      %s21 = int_to_ptr.hbm [resolvable:$true] %s20
      %s22 = sshll.u32 [#allocation2], 4
      %s23 = int_to_ptr.vmem [resolvable:$true] %s22
      %28 = dma.hbm_to_vmem [thread:$0]  %s21, 256, %s23, [#allocation3], 128, 128, 8
    $region5: #{tpu_custom_call.1} parent=1 // pred_fallthru
      _
    // Predicated region
    $region6: #{tpu_custom_call.1} parent=1 // pred_check
      _
    $region7: #{tpu_custom_call.1} parent=1 // pred_check_branch
      %30 = sbr.rel (0) target = $region9
    $region8: #{tpu_custom_call.1} parent=1 // pred_region
      %32 = vsyncadd [#allocation6], 0
      %s33 = sshll.u32 %s1, 4
      %s34 = int_to_ptr.hbm [resolvable:$true] %s33
      %s35 = sshll.u32 [#allocation5], 4
      %s36 = int_to_ptr.vmem [resolvable:$true] %s35
      %41 = dma.hbm_to_vmem [thread:$0]  %s34, 512, %s36, [#allocation6], 128, 128, 8
    $region9: #{tpu_custom_call.1} parent=1 // pred_fallthru
      _
    // Predicated region
    $region10: #{tpu_custom_call.1} parent=1 // pred_check
      _
    $region11: #{tpu_custom_call.1} parent=1 // pred_check_branch
      %43 = sbr.rel (0) target = $region13
    $region12: #{tpu_custom_call.1} parent=1 // pred_region
      _
    $region13: #{tpu_custom_call.1} parent=1 // pred_fallthru
      _
    // Predicated region
    $region14: #{tpu_custom_call.1} parent=1 // pred_check
      _
    $region15: #{tpu_custom_call.1} parent=1 // pred_check_branch
      %45 = sbr.rel (0) target = $region17
    $region16: #{tpu_custom_call.1} parent=1 // pred_region
      %47 = vsyncadd [#allocation6], 0
      %s48 = sshll.u32 %s3, 4
      %s49 = int_to_ptr.hbm [resolvable:$true] %s48
      %s50 = sshll.u32 [#allocation7], 4
      %s51 = int_to_ptr.vmem [resolvable:$true] %s50
      %56 = dma.hbm_to_vmem [thread:$0]  %s49, 2048, %s51, [#allocation6], 128, 128, 8
    $region17: #{tpu_custom_call.1} parent=1 // pred_fallthru
      _
    // Predicated region
    $region18: #{tpu_custom_call.1} parent=1 // pred_check
      _
    $region19: #{tpu_custom_call.1} parent=1 // pred_check_branch
      %58 = sbr.rel (0) target = $region21
    $region20: #{tpu_custom_call.1} parent=1 // pred_region
      _
    $region21: #{tpu_custom_call.1} parent=1 // pred_fallthru
      _
    // Predicated region
    $region22: #{tpu_custom_call.1} parent=1 // pred_check
      _
    $region23: #{tpu_custom_call.1} parent=1 // pred_check_branch
      %60 = sbr.rel (0) target = $region25
    $region24: #{tpu_custom_call.1} parent=1 // pred_region
      %62 = vsyncadd [#allocation9], 0
      %s63 = sshll.u32 %s5, 4
      %s64 = int_to_ptr.hbm [resolvable:$true] %s63
      %s65 = sshll.u32 [#allocation8], 4
      %s66 = int_to_ptr.vmem [resolvable:$true] %s65
      %71 = dma.hbm_to_vmem [thread:$0]  %s64, 2048, %s66, [#allocation9], 128, 128, 8
    $region25: #{tpu_custom_call.1} parent=1 // pred_fallthru
      _
    // Predicated region
    $region26: #{tpu_custom_call.1} parent=1 // pred_check
      _
    $region27: #{tpu_custom_call.1} parent=1 // pred_check_branch
      %73 = sbr.rel (0) target = $region29
    $region28: #{tpu_custom_call.1} parent=1 // pred_region
      _
    $region29: #{tpu_custom_call.1} parent=1 // pred_fallthru
      _
    // Predicated region
    $region30: #{tpu_custom_call.1} parent=1 // pred_check
      _
    $region31: #{tpu_custom_call.1} parent=1 // pred_check_branch
      %75 = sbr.rel (0) target = $region33
    $region32: #{tpu_custom_call.1} parent=1 // pred_region
      %77 = dma.done [#allocation3], 256
    $region33: #{tpu_custom_call.1} parent=1 // pred_fallthru
      _
    // Predicated region
    $region34: #{tpu_custom_call.1} parent=1 // pred_check
      _
    $region35: #{tpu_custom_call.1} parent=1 // pred_check_branch
      %79 = sbr.rel (0) target = $region37
    $region36: #{tpu_custom_call.1} parent=1 // pred_region
      %81 = dma.done [#allocation6], 512
    $region37: #{tpu_custom_call.1} parent=1 // pred_fallthru
      _
    // Predicated region
    $region38: #{tpu_custom_call.1} parent=1 // pred_check
      _
    $region39: #{tpu_custom_call.1} parent=1 // pred_check_branch
      %83 = sbr.rel (0) target = $region41
    $region40: #{tpu_custom_call.1} parent=1 // pred_region
      %85 = dma.done [#allocation6], 2048
    $region41: #{tpu_custom_call.1} parent=1 // pred_fallthru
      _
    // Predicated region
    $region42: #{tpu_custom_call.1} parent=1 // pred_check
      _
    $region43: #{tpu_custom_call.1} parent=1 // pred_check_branch
      %87 = sbr.rel (0) target = $region45
    $region44: #{tpu_custom_call.1} parent=1 // pred_region
      %89 = dma.done [#allocation9], 2048
    $region45: #{tpu_custom_call.1} parent=1 // pred_fallthru
      _
    %v90 = vld [vmem:[#allocation2] sm:$0xff]
    %v91 = vld [vmem:[#allocation2 + $0x8] sm:$0xff]
    %v92 = vld [vmem:[#allocation5] sm:$0xff]
    %v93 = vld [vmem:[#allocation5 + $0x8] sm:$0xff]
    %v94 = vld [vmem:[#allocation5 + $0x10] sm:$0xff]
    %v95 = vld [vmem:[#allocation5 + $0x18] sm:$0xff]
    %v96 = vld [vmem:[%s2] sm:$0x1]
    %v98 = vperm.slane %v96, 0
    %vm100 = vcmask 261120
    %v102 = vsel %vm100, %v90, 0
    %v105 = vsel %vm100, %v91, 0
    %107 = vmatpush.msra.mxu0 0.0
    %108 = vmatpush.msra.mxu0 0.0
    %109 = vmatpush.msra.mxu0 0.0
    %110 = vmatpush.msra.mxu0 0.0
    %111 = vmatpush.msra.mxu0 0.0
    %112 = vmatpush.msra.mxu0 0.0
    %113 = vmatpush.msra.mxu0 0.0
    %114 = vmatpush.msra.mxu0 0.0
    %115 = vmatpush.msra.mxu0 0.0
    %116 = vmatpush.msra.mxu0 0.0
    %117 = vmatpush.msra.mxu0 0.0
    %118 = vmatpush.msra.mxu0 0.0
    %119 = vmatpush.msra.mxu0 %v95
    %120 = vmatpush.msra.mxu0 %v94
    %121 = vmatpush.msra.mxu0 %v93
    %122 = vmatpush.msra.mxu0 %v92
    %123 = vmatmul.f32.gmra.mxu0 %v102
    %v124 = vpop.f32.mrf.mxu0
    %v125 = vadd.f32 %v98, %v124
    %126 = vmatmul.f32.gmra.mxu0 %v105
    %v127 = vpop.f32.mrf.mxu0
    %v128 = vadd.f32 %v98, %v127
    %129 = vdwg.mxu0
    %v130 = vmax.f32 %v125, 0.0
    %v131 = vmax.f32 %v128, 0.0
    %v132 = vld [vmem:[#allocation7] sm:$0xff]
    %v133 = vld [vmem:[#allocation7 + $0x8] sm:$0xff]
    %v134 = vld [vmem:[#allocation7 + $0x10] sm:$0xff]
    %v135 = vld [vmem:[#allocation7 + $0x18] sm:$0xff]
    %v136 = vld [vmem:[#allocation7 + $0x20] sm:$0xff]
    %v137 = vld [vmem:[#allocation7 + $0x28] sm:$0xff]
    %v138 = vld [vmem:[#allocation7 + $0x30] sm:$0xff]
    %v139 = vld [vmem:[#allocation7 + $0x38] sm:$0xff]
    %v140 = vld [vmem:[#allocation7 + $0x40] sm:$0xff]
    %v141 = vld [vmem:[#allocation7 + $0x48] sm:$0xff]
    %v142 = vld [vmem:[#allocation7 + $0x50] sm:$0xff]
    %v143 = vld [vmem:[#allocation7 + $0x58] sm:$0xff]
    %v144 = vld [vmem:[#allocation7 + $0x60] sm:$0xff]
    %v145 = vld [vmem:[#allocation7 + $0x68] sm:$0xff]
    %v146 = vld [vmem:[#allocation7 + $0x70] sm:$0xff]
    %v147 = vld [vmem:[#allocation7 + $0x78] sm:$0xff]
    %v148 = vld [vmem:[%s4] sm:$0x1]
    %v150 = vperm.slane %v148, 0
    %152 = vmatpush.msra.mxu0 %v147
    %153 = vmatpush.msra.mxu0 %v146
    %154 = vmatpush.msra.mxu0 %v145
    %155 = vmatpush.msra.mxu0 %v144
    %156 = vmatpush.msra.mxu0 %v143
    %157 = vmatpush.msra.mxu0 %v142
    %158 = vmatpush.msra.mxu0 %v141
    %159 = vmatpush.msra.mxu0 %v140
    %160 = vmatpush.msra.mxu0 %v139
    %161 = vmatpush.msra.mxu0 %v138
    %162 = vmatpush.msra.mxu0 %v137
    %163 = vmatpush.msra.mxu0 %v136
    %164 = vmatpush.msra.mxu0 %v135
    %165 = vmatpush.msra.mxu0 %v134
    %166 = vmatpush.msra.mxu0 %v133
    %167 = vmatpush.msra.mxu0 %v132
    %168 = vmatmul.f32.gmra.mxu0 %v130
    %v169 = vpop.f32.mrf.mxu0
    %v170 = vadd.f32 %v150, %v169
    %171 = vmatmul.f32.gmra.mxu0 %v131
    %v172 = vpop.f32.mrf.mxu0
    %v173 = vadd.f32 %v150, %v172
    %174 = vdwg.mxu0
    %v175 = vmax.f32 %v170, 0.0
    %v176 = vmax.f32 %v173, 0.0
    %v177 = vld [vmem:[#allocation8] sm:$0xff]
    %v178 = vld [vmem:[#allocation8 + $0x8] sm:$0xff]
    %v179 = vld [vmem:[#allocation8 + $0x10] sm:$0xff]
    %v180 = vld [vmem:[#allocation8 + $0x18] sm:$0xff]
    %v181 = vld [vmem:[#allocation8 + $0x20] sm:$0xff]
    %v182 = vld [vmem:[#allocation8 + $0x28] sm:$0xff]
    %v183 = vld [vmem:[#allocation8 + $0x30] sm:$0xff]
    %v184 = vld [vmem:[#allocation8 + $0x38] sm:$0xff]
    %v185 = vld [vmem:[#allocation8 + $0x40] sm:$0xff]
    %v186 = vld [vmem:[#allocation8 + $0x48] sm:$0xff]
    %v187 = vld [vmem:[#allocation8 + $0x50] sm:$0xff]
    %v188 = vld [vmem:[#allocation8 + $0x58] sm:$0xff]
    %v189 = vld [vmem:[#allocation8 + $0x60] sm:$0xff]
    %v190 = vld [vmem:[#allocation8 + $0x68] sm:$0xff]
    %v191 = vld [vmem:[#allocation8 + $0x70] sm:$0xff]
    %v192 = vld [vmem:[#allocation8 + $0x78] sm:$0xff]
    %v193 = vld [vmem:[%s6] sm:$0x1]
    %v195 = vperm.slane %v193, 0
    %197 = vmatpush.msra.mxu0 %v192
    %198 = vmatpush.msra.mxu0 %v191
    %199 = vmatpush.msra.mxu0 %v190
    %200 = vmatpush.msra.mxu0 %v189
    %201 = vmatpush.msra.mxu0 %v188
    %202 = vmatpush.msra.mxu0 %v187
    %203 = vmatpush.msra.mxu0 %v186
    %204 = vmatpush.msra.mxu0 %v185
    %205 = vmatpush.msra.mxu0 %v184
    %206 = vmatpush.msra.mxu0 %v183
    %207 = vmatpush.msra.mxu0 %v182
    %208 = vmatpush.msra.mxu0 %v181
    %209 = vmatpush.msra.mxu0 %v180
    %210 = vmatpush.msra.mxu0 %v179
    %211 = vmatpush.msra.mxu0 %v178
    %212 = vmatpush.msra.mxu0 %v177
    %213 = vmatmul.f32.gmra.mxu0 %v175
    %v214 = vpop.f32.mrf.mxu0
    %v215 = vadd.f32 %v195, %v214
    %216 = vmatmul.f32.gmra.mxu0 %v176
    %v217 = vpop.f32.mrf.mxu0
    %v218 = vadd.f32 %v195, %v217
    %219 = vdwg.mxu0
    %vm220 = vcmask 80896
    %221 = vst.msk [vmem:[#allocation10] sm:$0xff] %vm220, %v215
    %222 = vst.msk [vmem:[#allocation10 + $0x8] sm:$0xff] %vm220, %v218
    // Predicated region
    $region46: #{tpu_custom_call.1} parent=1 // pred_check
      _
    $region47: #{tpu_custom_call.1} parent=1 // pred_check_branch
      %224 = sbr.rel (0) target = $region49
    $region48: #{tpu_custom_call.1} parent=1 // pred_region
      %226 = vsyncadd [#allocation4], 0
      %s227 = sshll.u32 [#allocation10], 4
      %s228 = int_to_ptr.vmem [resolvable:$true] %s227
      %s229 = sshll.u32 %s7, 4
      %s230 = int_to_ptr.hbm [resolvable:$true] %s229
      %235 = dma.vmem_to_hbm [thread:$0]  %s228, 256, %s230, [#allocation4], 128, 128, 8
    $region49: #{tpu_custom_call.1} parent=1 // pred_fallthru
      _
    // Predicated region
    $region50: #{tpu_custom_call.1} parent=1 // pred_check
      _
    $region51: #{tpu_custom_call.1} parent=1 // pred_check_branch
      %237 = sbr.rel (0) target = $region53
    $region52: #{tpu_custom_call.1} parent=1 // pred_region
      %239 = dma.done [#allocation4], 256
    $region53: #{tpu_custom_call.1} parent=1 // pred_fallthru
      _
    %240 = vsyncpa [#allocation3], 1
    %241 = vsyncpa [#allocation6], 1
    %242 = vsyncpa [#allocation9], 1
    %243 = vsyncpa [#allocation4], 1

</llo_original>
